<compile_context>
chip_gen: v6e
topology: v6e:2x2x1
jax: 0.10.0
libtpu: 0.0.40
codegen_flags: <defaults>
</compile_context>

<pallas_src>
import jax
import jax.numpy as jnp
from jax import lax
from jax.experimental import pallas as pl
from jax.experimental.pallas import tpu as pltpu

LANE = 128


def _round_up(x, m):
    return ((x + m - 1) // m) * m


def linear_relu_kernel(w_ref, b_ref, x_ref, o_ref):
    # w_ref: (OUT, IN)  [PyTorch nn.Linear layout, resident across tiles]
    # b_ref: (OUT, 1)   [resident]
    # x_ref: (IN, TB)   [batch on the lane axis -> lane-dense loads]
    # o_ref: (OUT, TB)  [lane-dense, unmasked stores]
    acc = lax.dot_general(
        w_ref[...], x_ref[...],
        dimension_numbers=(((1,), (0,)), ((), ())),   # contract IN
        preferred_element_type=jnp.float32,
    )
    acc = acc + b_ref[...]                            # broadcast (OUT,1) over batch lanes
    o_ref[...] = jnp.maximum(acc, 0.0).astype(o_ref.dtype)


def prepare_params(weight, bias):
    """One-time parameter prep (do NOT call per forward).

    weight stays in PyTorch (OUT, IN) layout; bias becomes a column (OUT, 1)
    so it broadcasts over the lane (batch) axis inside the kernel with no
    per-call reshape.
    """
    return weight, bias.reshape(bias.shape[0], 1)


def simple_net_forward_t(x_t, weight, bias_col, *, tb=8192, min_grid=2):
    """Transposed, lane-dense forward.

    x_t: (IN, B) f32; weight: (OUT, IN) f32; bias_col: (OUT, 1) f32.
    Returns out_t: (OUT, B) f32 = relu(weight @ x_t + bias_col).
    """
    IN, B = x_t.shape
    OUT = weight.shape[0]

    # Batch tile on the lane axis: multiple of 128, capped at tb, and (when the
    # batch is large enough) small enough to give >= min_grid grid steps so the
    # pipeline is active and both v7x TensorCores are fed.
    tb_eff = min(tb, _round_up(B, LANE))
    if B > LANE:
        tb_eff = min(tb_eff, max(LANE, _round_up(pl.cdiv(B, min_grid), LANE)))

    grid = (pl.cdiv(B, tb_eff),)

    out_t = pl.pallas_call(
        linear_relu_kernel,
        out_shape=jax.ShapeDtypeStruct((OUT, B), x_t.dtype),
        grid_spec=pltpu.PrefetchScalarGridSpec(
            num_scalar_prefetch=0,
            grid=grid,
            in_specs=[
                # weight & bias: resident across all batch tiles.
                pl.BlockSpec((OUT, IN), lambda i: (0, 0)),
                pl.BlockSpec((OUT, 1), lambda i: (0, 0)),
                # x_T: tiled along the lane (batch) axis; double-buffered DMA.
                pl.BlockSpec((IN, tb_eff), lambda i: (0, i)),
            ],
            out_specs=pl.BlockSpec((OUT, tb_eff), lambda i: (0, i)),
        ),
        compiler_params=pltpu.CompilerParams(
            # Batch tiles are independent -> shard across both v7x TensorCores
            # (no-op on v5e/v6e).
            dimension_semantics=("parallel",),
        ),
        cost_estimate=pl.CostEstimate(
            flops=2 * B * IN * OUT,
            transcendentals=0,
            bytes_accessed=4 * (B * IN + IN * OUT + OUT + B * OUT),
        ),
    )(weight, bias_col, x_t)

    return out_t


def simple_net_forward(x, weight, bias_col, *, tb=8192):
    """PyTorch-interface wrapper: x (B, IN) -> out (B, OUT).

    The transposes here are layout plumbing only; in a real pipeline keep the
    activations resident in the (IN, B) layout and call simple_net_forward_t.
    """
    out_t = simple_net_forward_t(x.T, weight, bias_col, tb=tb)
    return out_t.T


if __name__ == "__main__":
    key = jax.random.PRNGKey(0)
    k_x, k_w, k_b = jax.random.split(key, 3)

    B, IN, OUT = 256, 10, 5   # small, but exercises grid=(2,) with 128-lane tiles

    # Deterministic parameter init (mimics nn.Linear uniform(-1/sqrt(IN), 1/sqrt(IN))).
    bound = 1.0 / jnp.sqrt(jnp.float32(IN))
    weight = jax.random.uniform(k_w, (OUT, IN), jnp.float32, -bound, bound)
    bias = jax.random.uniform(k_b, (OUT,), jnp.float32, -bound, bound)

    x = jax.random.normal(k_x, (B, IN), jnp.float32)

    # One-time param prep (hoisted out of the per-call path).
    w_param, b_param = prepare_params(weight, bias)

    out = simple_net_forward(x, w_param, b_param)
    jax.block_until_ready(out)

    # Pure-JAX reference check.
    ref = jnp.maximum(x @ weight.T + bias, 0.0)
    assert out.shape == (B, OUT)
    assert jnp.allclose(out, ref, atol=1e-5, rtol=1e-5)

    print("KERNEL_OK")
</pallas_src>

<mosaic_0001>
module attributes {stable_mosaic.version = 11 : i64} {
  func.func @linear_relu_kernel(%arg0: i32, %arg1: memref<5x10xf32, #tpu.memory_space<vmem>>, %arg2: memref<5x1xf32, #tpu.memory_space<vmem>>, %arg3: memref<10x128xf32, #tpu.memory_space<vmem>>, %arg4: memref<5x128xf32, #tpu.memory_space<vmem>>) attributes {dimension_semantics = [#tpu.dimension_semantics<parallel>], iteration_bounds = array<i64: 2>, scalar_prefetch = 0 : i64, scratch_operands = 0 : i64, tpu.core_type = #tpu.core_type<tc>, window_params = [{pipeline_mode = #tpu.pipeline_mode<synchronous>, transform_indices = @transform_0, window_bounds = array<i64: 5, 10>}, {pipeline_mode = #tpu.pipeline_mode<synchronous>, transform_indices = @transform_1, window_bounds = array<i64: 5, 1>}, {transform_indices = @transform_2, window_bounds = array<i64: 10, 128>}, {transform_indices = @transform_3, window_bounds = array<i64: 5, 128>}]} {
    %c0 = arith.constant 0 : index
    %c0_0 = arith.constant 0 : index
    %0 = vector.load %arg1[%c0, %c0_0] : memref<5x10xf32, #tpu.memory_space<vmem>>, vector<5x10xf32>
    %c0_1 = arith.constant 0 : index
    %c0_2 = arith.constant 0 : index
    %1 = vector.load %arg3[%c0_1, %c0_2] : memref<10x128xf32, #tpu.memory_space<vmem>>, vector<10x128xf32>
    %cst = arith.constant dense<0.000000e+00> : vector<5x128xf32>
    %2 = tpu.matmul %0, %1, %cst {dimension_numbers = #tpu.dot_dimension_numbers<[1], [0], [0], [1], [0, 0, 1, 1], [], []>} : vector<5x10xf32>, vector<10x128xf32>, vector<5x128xf32> -> vector<5x128xf32>
    %c0_3 = arith.constant 0 : index
    %c0_4 = arith.constant 0 : index
    %3 = vector.load %arg2[%c0_3, %c0_4] : memref<5x1xf32, #tpu.memory_space<vmem>>, vector<5x1xf32>
    %4 = vector.broadcast %3 : vector<5x1xf32> to vector<5x128xf32>
    %5 = arith.addf %2, %4 : vector<5x128xf32>
    %cst_5 = arith.constant 0.000000e+00 : f32
    %6 = vector.broadcast %cst_5 : f32 to vector<5x128xf32>
    %7 = arith.maximumf %5, %6 : vector<5x128xf32>
    %c0_6 = arith.constant 0 : index
    %c0_7 = arith.constant 0 : index
    %8 = vector.load %arg4[%c0_6, %c0_7] : memref<5x128xf32, #tpu.memory_space<vmem>>, vector<5x128xf32>
    tpu.vector_store %arg4[%c0_6, %c0_7], %7 {strides = array<i32>} : memref<5x128xf32, #tpu.memory_space<vmem>>, vector<5x128xf32>,
    return
  }
  func.func @transform_0(%arg0: i32) -> (i32, i32) {
    %c0_i32 = arith.constant 0 : i32
    %c0_i32_0 = arith.constant 0 : i32
    %c0_i32_1 = arith.constant 0 : i32
    return %c0_i32, %c0_i32_0 : i32, i32
  }
  func.func @transform_1(%arg0: i32) -> (i32, i32) {
    %c0_i32 = arith.constant 0 : i32
    %c0_i32_0 = arith.constant 0 : i32
    %c0_i32_1 = arith.constant 0 : i32
    return %c0_i32, %c0_i32_0 : i32, i32
  }
  func.func @transform_2(%arg0: i32) -> (i32, i32) {
    %c0_i32 = arith.constant 0 : i32
    %c0_i32_0 = arith.constant 0 : i32
    return %c0_i32, %arg0 : i32, i32
  }
  func.func @transform_3(%arg0: i32) -> (i32, i32) {
    %c0_i32 = arith.constant 0 : i32
    %c0_i32_0 = arith.constant 0 : i32
    return %c0_i32, %arg0 : i32, i32
  }
}

</mosaic_0001>

<llo_original>
// kernel: tpu_custom_call.1
$region0: #{tpu_custom_call.1}
  #allocation0 [shape = 'u32[]', space=smem, size = 0x4, offset = 0x4, fixed_abs, tag = 'smem constant byte address 0x4 - core index']
  #allocation1 [shape = 'u32[144,128]{1,0:T(1,128)}', space=vmem, size = 0x12000, scoped, tag = 'internal scratch']
  %s0 = inlined_call_operand.vmem [shape: f32[5,10], index: 0, kind: input, shape index: {}]
  %s1 = inlined_call_operand.vmem [shape: f32[5,1], index: 1, kind: input, shape index: {}]
  %s2 = inlined_call_operand.hbm [shape: f32[10,256], index: 2, kind: input, shape index: {}]
  %s3 = inlined_call_operand.hbm [shape: f32[5,256], index: 3, kind: output, shape index: {}]
  %s4 = sld [smem:[#allocation0]]
  $region49: #{tpu_custom_call.1} parent=0
    _
  %s6 = ssub.s32 1, %s4
  %s7 = scalar_select 0, %s6, %s4
  $region1: #{tpu_custom_call.1} parent=0
    #allocation2 [shape = 'u8[16384]{0}', space=vmem, size = 0x4000, scoped, tag = 'input window, operand 2']
    #allocation3 [shape = 's32[2]{0}', space=sflag, size = 0x8, scoped, tag = 'scoped memory for tpu_custom_call.1']
    #allocation4 [shape = 's32[2]{0}', space=sflag, size = 0x8, scoped, tag = 'scoped memory for tpu_custom_call.1']
    #allocation5 [shape = 'u8[8192]{0}', space=vmem, size = 0x2000, scoped, tag = 'output window, operand 0']
    %8 = vsyncpa [#allocation3], 0
    %s9 = scalar_lea.sflag [#allocation3], 1
    %10 = vsyncpa %s9, 0
    %11 = vsyncpa [#allocation4], 0
    %s12 = scalar_lea.sflag [#allocation4], 1
    %13 = vsyncpa %s12, 0
    loop: start=0, step=1, limit=4
    $region2: #{tpu_custom_call.1} parent=1 // loop_pre_header
      _
    $region3: #{tpu_custom_call.1} parent=1 // loop_header
      %s15 = sphi 0, %s19
      %p16 = scmp.ge.s32.totalorder %s15, 4
      %s23 = sphi 0, %s23
      %s25 = sphi 0, %s23
      %s26 = sphi 0, %s25
      %s40 = sphi 0, %s26
      %s44 = sphi 0, %s44
      %s46 = sphi 0, %s44
      %s47 = sphi 0, %s46
      %s61 = sphi 0, %s47
      %s67 = sphi 0, %s69
      %s70 = sphi 0, %s67
      %s71 = sphi 0, %s70
      %s87 = sphi 0, %s71
      %s93 = sphi 0, %s95
      %s96 = sphi 0, %s93
      %s97 = sphi 0, %s96
      %s113 = sphi 0, %s97
    $region4: #{tpu_custom_call.1} parent=1 // loop_header_branch
      %18 = sbr.rel (%p16) target = $region8
    $region5: #{tpu_custom_call.1} parent=1 // loop_body
      %s20 = ssub.s32 %s15, 1
      %s21 = ssub.s32 %s15, 2
      %s22 = sadd.s32 %s15, 1
      %s24 = sadd.s32 %s23, 1
      %p27 = scmp.eq.s32.totalorder %s15, 1
      %p28 = scmp.ne.s32.totalorder %s23, %s25
      %p29 = scmp.eq.s32.totalorder %s15, 0
      %p30 = por %p28, %p29
      %p31 = scmp.ne.s32.totalorder %s23, %s25
      %p32 = scmp.eq.s32.totalorder %s20, 1
      %p33 = por %p31, %p32
      %p34 = scmp.ne.s32.totalorder %s25, %s26
      %p35 = scmp.eq.s32.totalorder %s20, 0
      %p36 = por %p34, %p35
      %p37 = scmp.ne.s32.totalorder %s25, %s26
      %p38 = scmp.eq.s32.totalorder %s21, 1
      %p39 = por %p37, %p38
      %p41 = scmp.ne.s32.totalorder %s26, %s40
      %p42 = scmp.eq.s32.totalorder %s21, 0
      %p43 = por %p41, %p42
      %s45 = sadd.s32 %s44, 1
      %p48 = scmp.eq.s32.totalorder %s15, 1
      %p49 = scmp.ne.s32.totalorder %s44, %s46
      %p50 = scmp.eq.s32.totalorder %s15, 0
      %p51 = por %p49, %p50
      %p52 = scmp.ne.s32.totalorder %s44, %s46
      %p53 = scmp.eq.s32.totalorder %s20, 1
      %p54 = por %p52, %p53
      %p55 = scmp.ne.s32.totalorder %s46, %s47
      %p56 = scmp.eq.s32.totalorder %s20, 0
      %p57 = por %p55, %p56
      %p58 = scmp.ne.s32.totalorder %s46, %s47
      %p59 = scmp.eq.s32.totalorder %s21, 1
      %p60 = por %p58, %p59
      %p62 = scmp.ne.s32.totalorder %s47, %s61
      %p63 = scmp.eq.s32.totalorder %s21, 0
      %p64 = por %p62, %p63
      %s65 = ssub.s32 %s15, %s22
      %p66 = scmp.eq.s32.totalorder %s65, 0
      %s68 = sadd.s32 %s67, 1
      %s69 = scalar_select %p66, %s67, %s68
      %p72 = pneg %p66
      %p73 = scmp.eq.s32.totalorder %s15, 1
      %p74 = por %p72, %p73
      %p75 = scmp.ne.s32.totalorder %s67, %s70
      %p76 = scmp.eq.s32.totalorder %s15, 0
      %p77 = por %p75, %p76
      %p78 = scmp.ne.s32.totalorder %s67, %s70
      %p79 = scmp.eq.s32.totalorder %s20, 1
      %p80 = por %p78, %p79
      %p81 = scmp.ne.s32.totalorder %s70, %s71
      %p82 = scmp.eq.s32.totalorder %s20, 0
      %p83 = por %p81, %p82
      %p84 = scmp.ne.s32.totalorder %s70, %s71
      %p85 = scmp.eq.s32.totalorder %s21, 1
      %p86 = por %p84, %p85
      %p88 = scmp.ne.s32.totalorder %s71, %s87
      %p89 = scmp.eq.s32.totalorder %s21, 0
      %p90 = por %p88, %p89
      %s91 = ssub.s32 %s15, %s22
      %p92 = scmp.eq.s32.totalorder %s91, 0
      %s94 = sadd.s32 %s93, 1
      %s95 = scalar_select %p92, %s93, %s94
      %p98 = pneg %p92
      %p99 = scmp.eq.s32.totalorder %s15, 1
      %p100 = por %p98, %p99
      %p101 = scmp.ne.s32.totalorder %s93, %s96
      %p102 = scmp.eq.s32.totalorder %s15, 0
      %p103 = por %p101, %p102
      %p104 = scmp.ne.s32.totalorder %s93, %s96
      %p105 = scmp.eq.s32.totalorder %s20, 1
      %p106 = por %p104, %p105
      %p107 = scmp.ne.s32.totalorder %s96, %s97
      %p108 = scmp.eq.s32.totalorder %s20, 0
      %p109 = por %p107, %p108
      %p110 = scmp.ne.s32.totalorder %s96, %s97
      %p111 = scmp.eq.s32.totalorder %s21, 1
      %p112 = por %p110, %p111
      %p114 = scmp.ne.s32.totalorder %s97, %s113
      %p115 = scmp.eq.s32.totalorder %s21, 0
      %p116 = por %p114, %p115
      %p117 = scmp.le.s32.totalorder 1, %s15
      %p118 = scmp.lt.s32.totalorder %s15, 3
      %p119 = pnand %p117, %p118
      %p120 = pneg %p119
      // Predicated region
      $region9: #{tpu_custom_call.1} parent=5 // pred_check
        _
      $region10: #{tpu_custom_call.1} parent=5 // pred_check_branch
        %122 = sbr.rel (%p119) target = $region12
      $region11: #{tpu_custom_call.1} parent=5 // pred_region
        %s123 = ssub.s32 %s15, 1
        // Predicated region
        $region13: #{tpu_custom_call.1} parent=11 // pred_check
          %p124 = pneg %p36
        $region14: #{tpu_custom_call.1} parent=11 // pred_check_branch
          %126 = sbr.rel (%p124) target = $region16
        $region15: #{tpu_custom_call.1} parent=11 // pred_region
          _
        $region16: #{tpu_custom_call.1} parent=11 // pred_fallthru
          _
        // Predicated region
        $region17: #{tpu_custom_call.1} parent=11 // pred_check
          %p127 = pneg %p57
        $region18: #{tpu_custom_call.1} parent=11 // pred_check_branch
          %129 = sbr.rel (%p127) target = $region20
        $region19: #{tpu_custom_call.1} parent=11 // pred_region
          _
        $region20: #{tpu_custom_call.1} parent=11 // pred_fallthru
          _
      $region12: #{tpu_custom_call.1} parent=5 // pred_fallthru
        _
      %p130 = scmp.lt.s32.totalorder %s15, 2
      // Predicated region
      $region21: #{tpu_custom_call.1} parent=5 // pred_check
        %p131 = pneg %p130
      $region22: #{tpu_custom_call.1} parent=5 // pred_check_branch
        %133 = sbr.rel (%p131) target = $region24
      $region23: #{tpu_custom_call.1} parent=5 // pred_region
        // Predicated region
        $region25: #{tpu_custom_call.1} parent=23 // pred_check
          %p134 = pneg %p77
        $region26: #{tpu_custom_call.1} parent=23 // pred_check_branch
          %136 = sbr.rel (%p134) target = $region28
        $region27: #{tpu_custom_call.1} parent=23 // pred_region
          %s137 = sand.u32 %s67, 1
          %s138 = scalar_lea.sflag [#allocation3], %s137
          %s139 = sand.u32 %s67, 1
          %s140 = smul.addr %s139, 16
          %s141 = scalar_lea.vmem [#allocation2], %s140
          %s143 = ssub.s32 256, 256
          %144 = vsyncadd %s138, %s143
          %s145 = smul.addr %s15, 128
          %s146 = scalar_lea.hbm %s2, %s145
          %s147 = sshll.u32 %s141, 4
          %s148 = int_to_ptr.vmem [resolvable:$true] %s147
          %153 = dma.hbm_to_vmem [thread:$0]  %s146, 256, %s148, %s138, 256, 128, 8
        $region28: #{tpu_custom_call.1} parent=23 // pred_fallthru
          _
      $region24: #{tpu_custom_call.1} parent=5 // pred_fallthru
        _
      %p154 = scmp.le.s32.totalorder 1, %s15
      %p155 = scmp.lt.s32.totalorder %s15, 3
      %p156 = pnand %p154, %p155
      %p157 = pneg %p156
      // Predicated region
      $region29: #{tpu_custom_call.1} parent=5 // pred_check
        _
      $region30: #{tpu_custom_call.1} parent=5 // pred_check_branch
        %159 = sbr.rel (%p156) target = $region32
      $region31: #{tpu_custom_call.1} parent=5 // pred_region
        %s160 = ssub.s32 %s15, 1
        %s161 = sand.u32 %s70, 1
        %s162 = scalar_lea.sflag [#allocation3], %s161
        %s163 = sand.u32 %s70, 1
        %s164 = smul.addr %s163, 16
        %s165 = scalar_lea.vmem [#allocation2], %s164
        // Predicated region
        $region33: #{tpu_custom_call.1} parent=31 // pred_check
          %p166 = pneg %p83
        $region34: #{tpu_custom_call.1} parent=31 // pred_check_branch
          %168 = sbr.rel (%p166) target = $region36
        $region35: #{tpu_custom_call.1} parent=31 // pred_region
          %169 = dma.done %s162, 256
        $region36: #{tpu_custom_call.1} parent=31 // pred_fallthru
          _
        %p170 = pneg %p36
        %p171 = pneg %p33
        %p172 = pneg %p57
        %p173 = pneg %p54
        %s174 = sand.u32 %s70, 1
        %s175 = scalar_lea.sflag [#allocation3], %s174
        %s176 = sand.u32 %s70, 1
        %s177 = smul.addr %s176, 16
        %s178 = scalar_lea.vmem [#allocation2], %s177
        %p179 = pneg %p83
        %p180 = pneg %p80
        %p181 = pneg %p109
        %p182 = pneg %p106
        %s183 = sand.u32 %s96, 1
        %s184 = scalar_lea.sflag [#allocation4], %s183
        %s185 = sand.u32 %s96, 1
        %s186 = smul.addr %s185, 8
        %s187 = scalar_lea.vmem [#allocation5], %s186
        %v188 = vld [vmem:[%s0] sm:$0x1f]
        %v189 = vld [vmem:[%s165] sm:$0xff]
        %v190 = vld [vmem:[%s165 + $0x8] sm:$0x3]
        %v191 = vld [vmem:[%s1] sm:$0x1f]
        %193 = vset.pattern.permute.xlu0 0
        %194 = vperm.xlu0 %193, %v191
        %v195 = vpop.permute.xlu0 %194
        %vm197 = vcmask 80896
        %v199 = vsel %vm197, %v188, 0
        %vm201 = vcmask 1041408
        %v203 = vsel %vm201, %v190, 0
        %205 = vmatprep.subr.mxu0 0.0
        %206 = vmatpush1.msra.mxu0 0.0
        %207 = vmatprep.subr.mxu0 0.0
        %208 = vmatpush1.msra.mxu0 0.0
        %209 = vmatprep.subr.mxu0 0.0
        %210 = vmatpush1.msra.mxu0 0.0
        %211 = vmatprep.subr.mxu0 0.0
        %212 = vmatpush1.msra.mxu0 0.0
        %213 = vmatprep.subr.mxu0 0.0
        %214 = vmatpush1.msra.mxu0 0.0
        %215 = vmatprep.subr.mxu0 0.0
        %216 = vmatpush1.msra.mxu0 0.0
        %217 = vmatprep.subr.mxu0 0.0
        %218 = vmatpush1.msra.mxu0 0.0
        %219 = vmatprep.subr.mxu0 0.0
        %220 = vmatpush1.msra.mxu0 0.0
        %221 = vmatprep.subr.mxu0 0.0
        %222 = vmatpush1.msra.mxu0 0.0
        %223 = vmatprep.subr.mxu0 0.0
        %224 = vmatpush1.msra.mxu0 0.0
        %225 = vmatprep.subr.mxu0 0.0
        %226 = vmatpush1.msra.mxu0 0.0
        %227 = vmatprep.subr.mxu0 0.0
        %228 = vmatpush1.msra.mxu0 0.0
        %229 = vmatprep.subr.mxu0 0.0
        %230 = vmatpush1.msra.mxu0 0.0
        %231 = vmatprep.subr.mxu0 0.0
        %232 = vmatpush1.msra.mxu0 0.0
        %233 = vmatprep.subr.mxu0 0.0
        %234 = vmatpush1.msra.mxu0 %v203
        %235 = vmatprep.subr.mxu0 0.0
        %236 = vmatpush1.msra.mxu0 %v189
        %237 = vmatprep.subr.mxu0 0.0
        %238 = vmatpush2.msra.mxu0 0.0
        %239 = vmatprep.subr.mxu0 0.0
        %240 = vmatpush2.msra.mxu0 0.0
        %241 = vmatprep.subr.mxu0 0.0
        %242 = vmatpush2.msra.mxu0 0.0
        %243 = vmatprep.subr.mxu0 0.0
        %244 = vmatpush2.msra.mxu0 0.0
        %245 = vmatprep.subr.mxu0 0.0
        %246 = vmatpush2.msra.mxu0 0.0
        %247 = vmatprep.subr.mxu0 0.0
        %248 = vmatpush2.msra.mxu0 0.0
        %249 = vmatprep.subr.mxu0 0.0
        %250 = vmatpush2.msra.mxu0 0.0
        %251 = vmatprep.subr.mxu0 0.0
        %252 = vmatpush2.msra.mxu0 0.0
        %253 = vmatprep.subr.mxu0 0.0
        %254 = vmatpush2.msra.mxu0 0.0
        %255 = vmatprep.subr.mxu0 0.0
        %256 = vmatpush2.msra.mxu0 0.0
        %257 = vmatprep.subr.mxu0 0.0
        %258 = vmatpush2.msra.mxu0 0.0
        %259 = vmatprep.subr.mxu0 0.0
        %260 = vmatpush2.msra.mxu0 0.0
        %261 = vmatprep.subr.mxu0 0.0
        %262 = vmatpush2.msra.mxu0 0.0
        %263 = vmatprep.subr.mxu0 0.0
        %264 = vmatpush2.msra.mxu0 0.0
        %265 = vmatprep.subr.mxu0 0.0
        %266 = vmatpush2.msra.mxu0 0.0
        %267 = vmatprep.subr.mxu0 0.0
        %268 = vmatpush2.msra.mxu0 0.0
        %269 = vmatprep.mubr.f32.mxu0 0.0
        %270 = vmatmul.mubr.f32.gmra.mxu0 %v199
        %v271 = vpop.f32.mrf.mxu0
        %v272 = vadd.f32 %v195, %v271
        %v273 = vpop.f32.mrf.mxu0
        %274 = vdwg.mxu0
        %v275 = vmax.f32 %v272, 0.0
        %276 = vst [vmem:[%s187] sm:$0x1f] %v275
        %s277 = sand.u32 %s96, 1
        %s278 = scalar_lea.sflag [#allocation4], %s277
        %s279 = sand.u32 %s96, 1
        %s280 = smul.addr %s279, 8
        %s281 = scalar_lea.vmem [#allocation5], %s280
        // Predicated region
        $region37: #{tpu_custom_call.1} parent=31 // pred_check
          %p282 = pneg %p106
        $region38: #{tpu_custom_call.1} parent=31 // pred_check_branch
          %284 = sbr.rel (%p282) target = $region40
        $region39: #{tpu_custom_call.1} parent=31 // pred_region
          %s286 = ssub.s32 128, 128
          %287 = vsyncadd %s278, %s286
          %s288 = smul.addr %s20, 128
          %s289 = scalar_lea.hbm %s3, %s288
          %s291 = sshll.u32 %s281, 4
          %s292 = int_to_ptr.vmem [resolvable:$true] %s291
          %294 = dma.vmem_to_hbm [thread:$0]  %s292, 128, %s289, %s278
        $region40: #{tpu_custom_call.1} parent=31 // pred_fallthru
          _
      $region32: #{tpu_custom_call.1} parent=5 // pred_fallthru
        _
      %p295 = scmp.le.s32.totalorder 2, %s15
      // Predicated region
      $region41: #{tpu_custom_call.1} parent=5 // pred_check
        %p296 = pneg %p295
      $region42: #{tpu_custom_call.1} parent=5 // pred_check_branch
        %298 = sbr.rel (%p296) target = $region44
      $region43: #{tpu_custom_call.1} parent=5 // pred_region
        %s299 = ssub.s32 %s15, 2
        // Predicated region
        $region45: #{tpu_custom_call.1} parent=43 // pred_check
          %p300 = pneg %p112
        $region46: #{tpu_custom_call.1} parent=43 // pred_check_branch
          %302 = sbr.rel (%p300) target = $region48
        $region47: #{tpu_custom_call.1} parent=43 // pred_region
          %s303 = sand.u32 %s97, 1
          %s304 = scalar_lea.sflag [#allocation4], %s303
          %s305 = sand.u32 %s97, 1
          %s306 = smul.addr %s305, 8
          %s307 = scalar_lea.vmem [#allocation5], %s306
          %308 = dma.done %s304, 128
        $region48: #{tpu_custom_call.1} parent=43 // pred_fallthru
          _
      $region44: #{tpu_custom_call.1} parent=5 // pred_fallthru
        _
    $region6: #{tpu_custom_call.1} parent=1 // loop_footer
      %s19 = sadd.s32 1, %s15
    $region7: #{tpu_custom_call.1} parent=1 // loop_footer_branch
      %14 = sbr.rel target = $region3
    $region8: #{tpu_custom_call.1} parent=1 // loop_exit
      _
    %309 = vsyncpa [#allocation3], 1
    %s310 = scalar_lea.sflag [#allocation3], 1
    %311 = vsyncpa %s310, 1
    %312 = vsyncpa [#allocation4], 1
    %s313 = scalar_lea.sflag [#allocation4], 1
    %314 = vsyncpa %s313, 1

</llo_original>
